<compile_context>
chip_gen: v7x
topology: tpu7x:2x2x1
jax: 0.10.0
libtpu: 0.0.40
codegen_flags: <defaults>
</compile_context>

<pallas_src>
import jax
import jax.numpy as jnp
from jax.experimental import pallas as pl
from jax.experimental.pallas import tpu as pltpu

BLOCK_SIZE = 8      # T  (sequence length / tril size)
N_EMBD = 32         # C
HEAD_SIZE = 16      # H
GROUP = 16          # examples packed per 128-row score tile (GROUP * T == 128)
_GT = GROUP * BLOCK_SIZE      # 128
_MASK_VALUE = -1e30           # large finite; fully-masked entries underflow to 0


def _round_up(x, m):
    return ((x + m - 1) // m) * m


def head_kernel(x_ref, w_ref, bias_ref, o_ref):
    T, H = BLOCK_SIZE, HEAD_SIZE
    gt = _GT
    rows = o_ref.shape[0]          # bblk * T
    ng = rows // gt                # number of 128-row attention groups

    x = x_ref[...].astype(jnp.float32)          # (rows, C)
    w = w_ref[...].astype(jnp.float32)          # (C, 3H) == [Wk | Wq*scale | Wv]

    # --- fused k/q/v projection: one MXU pass with M = bblk*T ----------------
    kqv = jnp.dot(x, w, preferred_element_type=jnp.float32)     # (rows, 3H)
    k = kqv[:, 0 * H:1 * H].reshape(ng, gt, H)
    q = kqv[:, 1 * H:2 * H].reshape(ng, gt, H)                  # scale pre-folded
    v = kqv[:, 2 * H:3 * H].reshape(ng, gt, H)

    # --- scores: 16 examples share one (128,128) MXU tile ---------------------
    s = jnp.einsum('gte,gse->gts', q, k,
                   preferred_element_type=jnp.float32)          # (ng,128,128)
    # precomputed block-diagonal + causal mask as an additive 0/-1e30 bias;
    # every row keeps its own diagonal entry unmasked, so denom >= 1 (no NaNs)
    s = s + bias_ref[...]

    # --- numerically stable softmax numerator ---------------------------------
    m = jnp.max(s, axis=-1, keepdims=True)      # XLU lane-reduce (unavoidable)
    e = jnp.exp(s - m)                          # masked entries become exactly 0

    # --- softmax denominator on the MXU ---------------------------------------
    # e @ ones(128,16): row-sum replicated across H lanes, i.e. already in the
    # (rows, H) shape of the P.V output -> the normalisation below is 16-lane.
    ones_gh = jnp.ones((gt, H), dtype=jnp.float32)
    denom = jnp.dot(e.reshape(rows, gt), ones_gh,
                    preferred_element_type=jnp.float32)         # (rows, H)

    # --- un-normalised P.V, then flash-style late normalisation ---------------
    o_un = jnp.einsum('gts,gsh->gth', e, v,
                      preferred_element_type=jnp.float32).reshape(rows, H)
    inv = pl.reciprocal(denom, approx=True)     # EUP slot, off the VPU
    inv = inv * (2.0 - denom * inv)             # one Newton step -> f32 accurate
    o_ref[...] = (o_un * inv).astype(o_ref.dtype)


def head_forward(x, wk, wq, wv, *, block_b=512):
    """x: (B, T, C); wk/wq/wv: (C, H).  Returns (B, T, H), matching Head.forward."""
    B, T, C = x.shape
    H = wk.shape[1]
    assert T == BLOCK_SIZE and C == N_EMBD and H == HEAD_SIZE

    # fold the 1/sqrt(H) softmax scale into Wq and fuse the three projections
    # into a single (C, 3H) weight -> one MXU pass inside the kernel
    scale = jnp.float32(H) ** jnp.float32(-0.5)
    w = jnp.concatenate([wk, wq * scale, wv], axis=1).astype(jnp.float32)

    # combined same-example (block-diagonal) + causal additive mask (constant)
    r = jnp.arange(_GT)[:, None]
    c = jnp.arange(_GT)[None, :]
    keep = ((r // T) == (c // T)) & ((c % T) <= (r % T))
    bias = jnp.where(keep, 0.0, _MASK_VALUE).astype(jnp.float32)   # (128, 128)

    # batch tiling: multiples of GROUP, balanced across grid steps (no nearly
    # empty padding-only tail step); independent slabs -> "parallel" on v7x.
    steps = max(1, -(-B // block_b))                  # ceil(B / block_b)
    bblk = _round_up(-(-B // steps), GROUP)           # examples per grid step
    b_pad = bblk * steps
    grid = (steps,)

    # present x as a (B*T, C) slab so each grid step DMAs one dense rectangle
    x_flat = x.reshape(B * T, C)
    if b_pad != B:
        x_flat = jnp.pad(x_flat, ((0, (b_pad - B) * T), (0, 0)))

    out_flat = pl.pallas_call(
        head_kernel,
        out_shape=jax.ShapeDtypeStruct((b_pad * T, H), x.dtype),
        grid_spec=pltpu.PrefetchScalarGridSpec(
            num_scalar_prefetch=0,
            grid=grid,
            in_specs=[
                pl.BlockSpec((bblk * T, C), lambda i: (i, 0)),   # x slab
                pl.BlockSpec((C, 3 * H), lambda i: (0, 0)),      # fused weight
                pl.BlockSpec((_GT, _GT), lambda i: (0, 0)),      # mask bias
            ],
            out_specs=pl.BlockSpec((bblk * T, H), lambda i: (i, 0)),
        ),
        compiler_params=pltpu.CompilerParams(
            # independent batch slabs -> megacore-shardable on v7x; harmless
            # on single-core v5e/v6e.
            dimension_semantics=("parallel",),
            # above v5e's 16 MiB scoped default, well under v7x's 64 MiB
            # physical VMEM; ~10 MiB actually needed at block_b=512.
            vmem_limit_bytes=32 * 1024 * 1024,
        ),
    )(x_flat, w, bias)

    # (B*T, H) -> (B, T, H) is a free row-major view; drop batch padding
    return out_flat[:B * T].reshape(B, T, H)


def reference_head(x, wk, wq, wv):
    """Pure-JAX reference matching the PyTorch forward exactly."""
    k = x @ wk
    q = x @ wq
    v = x @ wv
    scores = (q @ jnp.swapaxes(k, -2, -1)) * (wk.shape[-1] ** -0.5)
    T = x.shape[1]
    tril = jnp.tril(jnp.ones((T, T), dtype=bool))
    scores = jnp.where(tril, scores, -jnp.inf)
    weights = jax.nn.softmax(scores, axis=-1)
    return weights @ v


if __name__ == "__main__":
    key = jax.random.PRNGKey(0)
    kx, kk, kq, kv, kx2 = jax.random.split(key, 5)

    B, T, C, H = 2, BLOCK_SIZE, N_EMBD, HEAD_SIZE
    x = jax.random.normal(kx, (B, T, C), dtype=jnp.float32)
    # nn.Linear(n_embd, head_size, bias=False)-shaped params, pre-transposed to (C, H)
    bound = 1.0 / (C ** 0.5)
    wk = jax.random.uniform(kk, (C, H), jnp.float32, -bound, bound)
    wq = jax.random.uniform(kq, (C, H), jnp.float32, -bound, bound)
    wv = jax.random.uniform(kv, (C, H), jnp.float32, -bound, bound)

    out = jax.block_until_ready(head_forward(x, wk, wq, wv))
    ref = reference_head(x, wk, wq, wv)
    assert out.shape == (B, T, H)
    assert jnp.allclose(out, ref, atol=1e-4, rtol=1e-4), "mismatch vs reference (B=2)"

    # also exercise the multi-group (ng>1) and batch-padding paths
    B2 = 33
    x2 = jax.random.normal(kx2, (B2, T, C), dtype=jnp.float32)
    out2 = jax.block_until_ready(head_forward(x2, wk, wq, wv))
    ref2 = reference_head(x2, wk, wq, wv)
    assert jnp.allclose(out2, ref2, atol=1e-4, rtol=1e-4), "mismatch vs reference (B=33)"

    print("KERNEL_OK")
</pallas_src>

<mosaic_0001>
module attributes {stable_mosaic.version = 11 : i64} {
  func.func @head_kernel(%arg0: i32, %arg1: memref<128x32xf32, #tpu.memory_space<vmem>>, %arg2: memref<32x48xf32, #tpu.memory_space<vmem>>, %arg3: memref<128x128xf32, #tpu.memory_space<vmem>>, %arg4: memref<128x16xf32, #tpu.memory_space<vmem>>) attributes {dimension_semantics = [#tpu.dimension_semantics<parallel>], iteration_bounds = array<i64: 1>, scalar_prefetch = 0 : i64, scratch_operands = 0 : i64, tpu.core_type = #tpu.core_type<tc>, window_params = [{transform_indices = @transform_0, window_bounds = array<i64: 128, 32>}, {pipeline_mode = #tpu.pipeline_mode<synchronous>, transform_indices = @transform_1, window_bounds = array<i64: 32, 48>}, {pipeline_mode = #tpu.pipeline_mode<synchronous>, transform_indices = @transform_2, window_bounds = array<i64: 128, 128>}, {transform_indices = @transform_3, window_bounds = array<i64: 128, 16>}]} {
    %c0 = arith.constant 0 : index
    %c0_0 = arith.constant 0 : index
    %0 = vector.load %arg1[%c0, %c0_0] : memref<128x32xf32, #tpu.memory_space<vmem>>, vector<128x32xf32>
    %c0_1 = arith.constant 0 : index
    %c0_2 = arith.constant 0 : index
    %1 = vector.load %arg2[%c0_1, %c0_2] : memref<32x48xf32, #tpu.memory_space<vmem>>, vector<32x48xf32>
    %cst = arith.constant dense<0.000000e+00> : vector<128x48xf32>
    %2 = tpu.matmul %0, %1, %cst {dimension_numbers = #tpu.dot_dimension_numbers<[1], [0], [0], [1], [0, 0, 1, 1], [], []>} : vector<128x32xf32>, vector<32x48xf32>, vector<128x48xf32> -> vector<128x48xf32>
    %3 = vector.extract_strided_slice %2 {offsets = [0, 0], sizes = [128, 16], strides = [1, 1]} : vector<128x48xf32> to vector<128x16xf32>
    %4 = vector.shape_cast %3 : vector<128x16xf32> to vector<1x128x16xf32>
    %5 = vector.extract_strided_slice %2 {offsets = [0, 16], sizes = [128, 16], strides = [1, 1]} : vector<128x48xf32> to vector<128x16xf32>
    %6 = vector.shape_cast %5 : vector<128x16xf32> to vector<1x128x16xf32>
    %7 = vector.extract_strided_slice %2 {offsets = [0, 32], sizes = [128, 16], strides = [1, 1]} : vector<128x48xf32> to vector<128x16xf32>
    %8 = vector.shape_cast %7 : vector<128x16xf32> to vector<1x128x16xf32>
    "tpu.trace_start"() <{level = 10 : i32, message = "gte,gse->gts"}> : () -> ()
    %cst_3 = arith.constant dense<0.000000e+00> : vector<1x128x128xf32>
    %9 = tpu.matmul %6, %4, %cst_3 {dimension_numbers = #tpu.dot_dimension_numbers<[2], [2], [1], [1], [0, 0, 0, 1, 1, 1], [0], [0]>} : vector<1x128x16xf32>, vector<1x128x16xf32>, vector<1x128x128xf32> -> vector<1x128x128xf32>
    "tpu.trace_stop"() : () -> ()
    %c0_4 = arith.constant 0 : index
    %c0_5 = arith.constant 0 : index
    %10 = vector.load %arg3[%c0_4, %c0_5] : memref<128x128xf32, #tpu.memory_space<vmem>>, vector<128x128xf32>
    %11 = vector.shape_cast %10 : vector<128x128xf32> to vector<1x128x128xf32>
    %12 = arith.addf %9, %11 : vector<1x128x128xf32>
    %cst_6 = arith.constant dense<0xFF800000> : vector<1x128xf32>
    %13 = vector.multi_reduction <maximumf>, %12, %cst_6 [2] : vector<1x128x128xf32> to vector<1x128xf32>
    %14 = vector.shape_cast %13 : vector<1x128xf32> to vector<1x128x1xf32>
    %15 = vector.broadcast %14 : vector<1x128x1xf32> to vector<1x128x128xf32>
    %16 = arith.subf %12, %15 : vector<1x128x128xf32>
    %17 = math.exp %16 : vector<1x128x128xf32>
    %cst_7 = arith.constant 1.000000e+00 : f32
    %18 = vector.broadcast %cst_7 : f32 to vector<128x16xf32>
    %19 = vector.shape_cast %17 : vector<1x128x128xf32> to vector<128x128xf32>
    %cst_8 = arith.constant dense<0.000000e+00> : vector<128x16xf32>
    %20 = tpu.matmul %19, %18, %cst_8 {dimension_numbers = #tpu.dot_dimension_numbers<[1], [0], [0], [1], [0, 0, 1, 1], [], []>} : vector<128x128xf32>, vector<128x16xf32>, vector<128x16xf32> -> vector<128x16xf32>
    "tpu.trace_start"() <{level = 10 : i32, message = "gts,gsh->gth"}> : () -> ()
    %cst_9 = arith.constant dense<0.000000e+00> : vector<1x128x16xf32>
    %21 = tpu.matmul %17, %8, %cst_9 {dimension_numbers = #tpu.dot_dimension_numbers<[2], [1], [1], [2], [0, 0, 0, 1, 1, 2], [0], [0]>} : vector<1x128x128xf32>, vector<1x128x16xf32>, vector<1x128x16xf32> -> vector<1x128x16xf32>
    "tpu.trace_stop"() : () -> ()
    %22 = vector.shape_cast %21 : vector<1x128x16xf32> to vector<128x16xf32>
    %23 = tpu.reciprocal %20 {approx = true} : vector<128x16xf32> -> vector<128x16xf32>
    %24 = arith.mulf %20, %23 : vector<128x16xf32>
    %cst_10 = arith.constant 2.000000e+00 : f32
    %25 = vector.broadcast %cst_10 : f32 to vector<128x16xf32>
    %26 = arith.subf %25, %24 : vector<128x16xf32>
    %27 = arith.mulf %23, %26 : vector<128x16xf32>
    %28 = arith.mulf %22, %27 : vector<128x16xf32>
    %c0_11 = arith.constant 0 : index
    %c0_12 = arith.constant 0 : index
    %29 = vector.load %arg4[%c0_11, %c0_12] : memref<128x16xf32, #tpu.memory_space<vmem>>, vector<128x16xf32>
    tpu.vector_store %arg4[%c0_11, %c0_12], %28 {strides = array<i32>} : memref<128x16xf32, #tpu.memory_space<vmem>>, vector<128x16xf32>,
    return
  }
  func.func @transform_0(%arg0: i32) -> (i32, i32) {
    %c0_i32 = arith.constant 0 : i32
    %c0_i32_0 = arith.constant 0 : i32
    return %arg0, %c0_i32 : i32, i32
  }
  func.func @transform_1(%arg0: i32) -> (i32, i32) {
    %c0_i32 = arith.constant 0 : i32
    %c0_i32_0 = arith.constant 0 : i32
    %c0_i32_1 = arith.constant 0 : i32
    return %c0_i32, %c0_i32_0 : i32, i32
  }
  func.func @transform_2(%arg0: i32) -> (i32, i32) {
    %c0_i32 = arith.constant 0 : i32
    %c0_i32_0 = arith.constant 0 : i32
    %c0_i32_1 = arith.constant 0 : i32
    return %c0_i32, %c0_i32_0 : i32, i32
  }
  func.func @transform_3(%arg0: i32) -> (i32, i32) {
    %c0_i32 = arith.constant 0 : i32
    %c0_i32_0 = arith.constant 0 : i32
    return %arg0, %c0_i32 : i32, i32
  }
}

</mosaic_0001>

<llo_original>
// kernel: tpu_custom_call.1
$region0: #{tpu_custom_call.1}
  #allocation0 [shape = 'u32[]', space=smem, size = 0x4, offset = 0x4, fixed_abs, tag = 'smem constant byte address 0x4 - core index']
  #allocation1 [shape = 'u32[144,128]{1,0:T(1,128)}', space=vmem, size = 0x12000, scoped, tag = 'internal scratch']
  %s0 = inlined_call_operand.vmem [shape: f32[128,32], index: 0, kind: input, shape index: {}]
  %s1 = inlined_call_operand.vmem [shape: f32[32,48], index: 1, kind: input, shape index: {}]
  %s2 = inlined_call_operand.vmem [shape: f32[128,128], index: 2, kind: input, shape index: {}]
  %s3 = inlined_call_operand.vmem [shape: f32[128,16], index: 3, kind: output, shape index: {}]
  %s4 = sld [smem:[#allocation0]]
  $region22: #{tpu_custom_call.1} parent=0
    _
  %s6 = ssub.s32 1, %s4
  %s7 = scalar_select 0, %s6, %s4
  // Predicated region
  $region2: #{tpu_custom_call.1} parent=0 // pred_check
    _
  $region3: #{tpu_custom_call.1} parent=0 // pred_check_branch
    %9 = sbr.rel (0) target = $region5
  $region4: #{tpu_custom_call.1} parent=0 // pred_region
    _
  $region5: #{tpu_custom_call.1} parent=0 // pred_fallthru
    _
  // Predicated region
  $region6: #{tpu_custom_call.1} parent=0 // pred_check
    _
  $region7: #{tpu_custom_call.1} parent=0 // pred_check_branch
    %11 = sbr.rel (0) target = $region9
  $region8: #{tpu_custom_call.1} parent=0 // pred_region
    _
  $region9: #{tpu_custom_call.1} parent=0 // pred_fallthru
    _
  // Predicated region
  $region10: #{tpu_custom_call.1} parent=0 // pred_check
    _
  $region11: #{tpu_custom_call.1} parent=0 // pred_check_branch
    %13 = sbr.rel (0) target = $region13
  $region12: #{tpu_custom_call.1} parent=0 // pred_region
    _
  $region13: #{tpu_custom_call.1} parent=0 // pred_fallthru
    _
  %v14 = vld [vmem:[%s0] sm:$0xff]
  %v15 = vld [vmem:[%s0 + $0x8] sm:$0xff]
  %v16 = vld [vmem:[%s0 + $0x10] sm:$0xff]
  %v17 = vld [vmem:[%s0 + $0x18] sm:$0xff]
  %v18 = vld [vmem:[%s0 + $0x20] sm:$0xff]
  %v19 = vld [vmem:[%s0 + $0x28] sm:$0xff]
  %v20 = vld [vmem:[%s0 + $0x30] sm:$0xff]
  %v21 = vld [vmem:[%s0 + $0x38] sm:$0xff]
  %v22 = vld [vmem:[%s0 + $0x40] sm:$0xff]
  %v23 = vld [vmem:[%s0 + $0x48] sm:$0xff]
  %v24 = vld [vmem:[%s0 + $0x50] sm:$0xff]
  %v25 = vld [vmem:[%s0 + $0x58] sm:$0xff]
  %v26 = vld [vmem:[%s0 + $0x60] sm:$0xff]
  %v27 = vld [vmem:[%s0 + $0x68] sm:$0xff]
  %v28 = vld [vmem:[%s0 + $0x70] sm:$0xff]
  %v29 = vld [vmem:[%s0 + $0x78] sm:$0xff]
  %v30 = vld [vmem:[%s1] sm:$0xff]
  %v31 = vld [vmem:[%s1 + $0x8] sm:$0xff]
  %v32 = vld [vmem:[%s1 + $0x10] sm:$0xff]
  %v33 = vld [vmem:[%s1 + $0x18] sm:$0xff]
  %vm34 = vcmask 261120
  %v36 = vsel %vm34, %v14, 0
  %v39 = vsel %vm34, %v15, 0
  %v42 = vsel %vm34, %v16, 0
  %v45 = vsel %vm34, %v17, 0
  %v48 = vsel %vm34, %v18, 0
  %v51 = vsel %vm34, %v19, 0
  %v54 = vsel %vm34, %v20, 0
  %v57 = vsel %vm34, %v21, 0
  %v60 = vsel %vm34, %v22, 0
  %v63 = vsel %vm34, %v23, 0
  %v66 = vsel %vm34, %v24, 0
  %v69 = vsel %vm34, %v25, 0
  %v72 = vsel %vm34, %v26, 0
  %v75 = vsel %vm34, %v27, 0
  %v78 = vsel %vm34, %v28, 0
  %v81 = vsel %vm34, %v29, 0
  %83 = vmatprep.subr.mxu0 0.0
  %84 = vmatpush1.msra.mxu0 %v30
  %85 = vmatprep.subr.mxu0 0.0
  %86 = vmatpush1.msra.mxu0 %v31
  %87 = vmatprep.subr.mxu0 0.0
  %88 = vmatpush1.msra.mxu0 %v32
  %89 = vmatprep.subr.mxu0 0.0
  %90 = vmatpush1.msra.mxu0 %v33
  %91 = vmatprep.subr.mxu0 0.0
  %92 = vmatpush1.msra.mxu0 0.0
  %93 = vmatprep.subr.mxu0 0.0
  %94 = vmatpush1.msra.mxu0 0.0
  %95 = vmatprep.subr.mxu0 0.0
  %96 = vmatpush1.msra.mxu0 0.0
  %97 = vmatprep.subr.mxu0 0.0
  %98 = vmatpush1.msra.mxu0 0.0
  %99 = vmatprep.subr.mxu0 0.0
  %100 = vmatpush1.msra.mxu0 0.0
  %101 = vmatprep.subr.mxu0 0.0
  %102 = vmatpush1.msra.mxu0 0.0
  %103 = vmatprep.subr.mxu0 0.0
  %104 = vmatpush1.msra.mxu0 0.0
  %105 = vmatprep.subr.mxu0 0.0
  %106 = vmatpush1.msra.mxu0 0.0
  %107 = vmatprep.subr.mxu0 0.0
  %108 = vmatpush1.msra.mxu0 0.0
  %109 = vmatprep.subr.mxu0 0.0
  %110 = vmatpush1.msra.mxu0 0.0
  %111 = vmatprep.subr.mxu0 0.0
  %112 = vmatpush1.msra.mxu0 0.0
  %113 = vmatprep.subr.mxu0 0.0
  %114 = vmatpush1.msra.mxu0 0.0
  %115 = vmatprep.subr.mxu0 0.0
  %116 = vmatpush1.msra.mxu0 0.0
  %117 = vmatprep.subr.mxu0 0.0
  %118 = vmatpush1.msra.mxu0 0.0
  %119 = vmatprep.subr.mxu0 0.0
  %120 = vmatpush1.msra.mxu0 0.0
  %121 = vmatprep.subr.mxu0 0.0
  %122 = vmatpush1.msra.mxu0 0.0
  %123 = vmatprep.subr.mxu0 0.0
  %124 = vmatpush1.msra.mxu0 0.0
  %125 = vmatprep.subr.mxu0 0.0
  %126 = vmatpush1.msra.mxu0 0.0
  %127 = vmatprep.subr.mxu0 0.0
  %128 = vmatpush1.msra.mxu0 0.0
  %129 = vmatprep.subr.mxu0 0.0
  %130 = vmatpush1.msra.mxu0 0.0
  %131 = vmatprep.subr.mxu0 0.0
  %132 = vmatpush1.msra.mxu0 0.0
  %133 = vmatprep.subr.mxu0 0.0
  %134 = vmatpush1.msra.mxu0 0.0
  %135 = vmatprep.subr.mxu0 0.0
  %136 = vmatpush1.msra.mxu0 0.0
  %137 = vmatprep.subr.mxu0 0.0
  %138 = vmatpush1.msra.mxu0 0.0
  %139 = vmatprep.subr.mxu0 0.0
  %140 = vmatpush1.msra.mxu0 0.0
  %141 = vmatprep.subr.mxu0 0.0
  %142 = vmatpush1.msra.mxu0 0.0
  %143 = vmatprep.subr.mxu0 0.0
  %144 = vmatpush1.msra.mxu0 0.0
  %145 = vmatprep.subr.mxu0 0.0
  %146 = vmatpush1.msra.mxu0 0.0
  %147 = vmatprep.mubr.f32.mxu0 0.0
  %148 = vmatmul.mubr.f32.gmra.mrb[0].mxu0 %v36
  %v149 = vpop.f32.mrb[0].mxu0
  %v150 = vadd.f32 0.0, %v149
  %v151 = vpop.f32.mrb[0].mxu0
  %152 = vmatprep.mubr.f32.mxu0 0.0
  %153 = vmatmul.mubr.f32.gmra.mrb[0].mxu0 %v39
  %v154 = vpop.f32.mrb[0].mxu0
  %v155 = vadd.f32 0.0, %v154
  %v156 = vpop.f32.mrb[0].mxu0
  %157 = vmatprep.mubr.f32.mxu0 0.0
  %158 = vmatmul.mubr.f32.gmra.mrb[0].mxu0 %v42
  %v159 = vpop.f32.mrb[0].mxu0
  %v160 = vadd.f32 0.0, %v159
  %v161 = vpop.f32.mrb[0].mxu0
  %162 = vmatprep.mubr.f32.mxu0 0.0
  %163 = vmatmul.mubr.f32.gmra.mrb[0].mxu0 %v45
  %v164 = vpop.f32.mrb[0].mxu0
  %v165 = vadd.f32 0.0, %v164
  %v166 = vpop.f32.mrb[0].mxu0
  %167 = vmatprep.mubr.f32.mxu0 0.0
  %168 = vmatmul.mubr.f32.gmra.mrb[0].mxu0 %v48
  %v169 = vpop.f32.mrb[0].mxu0
  %v170 = vadd.f32 0.0, %v169
  %v171 = vpop.f32.mrb[0].mxu0
  %172 = vmatprep.mubr.f32.mxu0 0.0
  %173 = vmatmul.mubr.f32.gmra.mrb[0].mxu0 %v51
  %v174 = vpop.f32.mrb[0].mxu0
  %v175 = vadd.f32 0.0, %v174
  %v176 = vpop.f32.mrb[0].mxu0
  %177 = vmatprep.mubr.f32.mxu0 0.0
  %178 = vmatmul.mubr.f32.gmra.mrb[0].mxu0 %v54
  %v179 = vpop.f32.mrb[0].mxu0
  %v180 = vadd.f32 0.0, %v179
  %v181 = vpop.f32.mrb[0].mxu0
  %182 = vmatprep.mubr.f32.mxu0 0.0
  %183 = vmatmul.mubr.f32.gmra.mrb[0].mxu0 %v57
  %v184 = vpop.f32.mrb[0].mxu0
  %v185 = vadd.f32 0.0, %v184
  %v186 = vpop.f32.mrb[0].mxu0
  %187 = vmatprep.mubr.f32.mxu0 0.0
  %188 = vmatmul.mubr.f32.gmra.mrb[0].mxu0 %v60
  %v189 = vpop.f32.mrb[0].mxu0
  %v190 = vadd.f32 0.0, %v189
  %v191 = vpop.f32.mrb[0].mxu0
  %192 = vmatprep.mubr.f32.mxu0 0.0
  %193 = vmatmul.mubr.f32.gmra.mrb[0].mxu0 %v63
  %v194 = vpop.f32.mrb[0].mxu0
  %v195 = vadd.f32 0.0, %v194
  %v196 = vpop.f32.mrb[0].mxu0
  %197 = vmatprep.mubr.f32.mxu0 0.0
  %198 = vmatmul.mubr.f32.gmra.mrb[0].mxu0 %v66
  %v199 = vpop.f32.mrb[0].mxu0
  %v200 = vadd.f32 0.0, %v199
  %v201 = vpop.f32.mrb[0].mxu0
  %202 = vmatprep.mubr.f32.mxu0 0.0
  %203 = vmatmul.mubr.f32.gmra.mrb[0].mxu0 %v69
  %v204 = vpop.f32.mrb[0].mxu0
  %v205 = vadd.f32 0.0, %v204
  %v206 = vpop.f32.mrb[0].mxu0
  %207 = vmatprep.mubr.f32.mxu0 0.0
  %208 = vmatmul.mubr.f32.gmra.mrb[0].mxu0 %v72
  %v209 = vpop.f32.mrb[0].mxu0
  %v210 = vadd.f32 0.0, %v209
  %v211 = vpop.f32.mrb[0].mxu0
  %212 = vmatprep.mubr.f32.mxu0 0.0
  %213 = vmatmul.mubr.f32.gmra.mrb[0].mxu0 %v75
  %v214 = vpop.f32.mrb[0].mxu0
  %v215 = vadd.f32 0.0, %v214
  %v216 = vpop.f32.mrb[0].mxu0
  %217 = vmatprep.mubr.f32.mxu0 0.0
  %218 = vmatmul.mubr.f32.gmra.mrb[0].mxu0 %v78
  %v219 = vpop.f32.mrb[0].mxu0
  %v220 = vadd.f32 0.0, %v219
  %v221 = vpop.f32.mrb[0].mxu0
  %222 = vmatprep.mubr.f32.mxu0 0.0
  %223 = vmatmul.mubr.f32.gmra.mrb[0].mxu0 %v81
  %v224 = vpop.f32.mrb[0].mxu0
  %v225 = vadd.f32 0.0, %v224
  %v226 = vpop.f32.mrb[0].mxu0
  %227 = vdwg.mxu0
  %v228 = vld [vmem:[%s2] sm:$0xff]
  %v229 = vld [vmem:[%s2 + $0x8] sm:$0xff]
  %v230 = vld [vmem:[%s2 + $0x10] sm:$0xff]
  %v231 = vld [vmem:[%s2 + $0x18] sm:$0xff]
  %v232 = vld [vmem:[%s2 + $0x20] sm:$0xff]
  %v233 = vld [vmem:[%s2 + $0x28] sm:$0xff]
  %v234 = vld [vmem:[%s2 + $0x30] sm:$0xff]
  %v235 = vld [vmem:[%s2 + $0x38] sm:$0xff]
  %v236 = vld [vmem:[%s2 + $0x40] sm:$0xff]
  %v237 = vld [vmem:[%s2 + $0x48] sm:$0xff]
  %v238 = vld [vmem:[%s2 + $0x50] sm:$0xff]
  %v239 = vld [vmem:[%s2 + $0x58] sm:$0xff]
  %v240 = vld [vmem:[%s2 + $0x60] sm:$0xff]
  %v241 = vld [vmem:[%s2 + $0x68] sm:$0xff]
  %v242 = vld [vmem:[%s2 + $0x70] sm:$0xff]
  %v243 = vld [vmem:[%s2 + $0x78] sm:$0xff]
  %260 = vrot.lane.b32.xlu0 %v150, 112
  %v261 = vpop.permute.xlu0 %260
  %262 = vrot.lane.b32.xlu0 %v155, 112
  %v263 = vpop.permute.xlu0 %262
  %264 = vrot.lane.b32.xlu0 %v160, 112
  %v265 = vpop.permute.xlu0 %264
  %266 = vrot.lane.b32.xlu0 %v165, 112
  %v267 = vpop.permute.xlu0 %266
  %268 = vrot.lane.b32.xlu0 %v170, 112
  %v269 = vpop.permute.xlu0 %268
  %270 = vrot.lane.b32.xlu0 %v175, 112
  %v271 = vpop.permute.xlu0 %270
  %272 = vrot.lane.b32.xlu0 %v180, 112
  %v273 = vpop.permute.xlu0 %272
  %274 = vrot.lane.b32.xlu0 %v185, 112
  %v275 = vpop.permute.xlu0 %274
  %276 = vrot.lane.b32.xlu0 %v190, 112
  %v277 = vpop.permute.xlu0 %276
  %278 = vrot.lane.b32.xlu0 %v195, 112
  %v279 = vpop.permute.xlu0 %278
  %280 = vrot.lane.b32.xlu0 %v200, 112
  %v281 = vpop.permute.xlu0 %280
  %282 = vrot.lane.b32.xlu0 %v205, 112
  %v283 = vpop.permute.xlu0 %282
  %284 = vrot.lane.b32.xlu0 %v210, 112
  %v285 = vpop.permute.xlu0 %284
  %286 = vrot.lane.b32.xlu0 %v215, 112
  %v287 = vpop.permute.xlu0 %286
  %288 = vrot.lane.b32.xlu0 %v220, 112
  %v289 = vpop.permute.xlu0 %288
  %290 = vrot.lane.b32.xlu0 %v225, 112
  %v291 = vpop.permute.xlu0 %290
  %vm292 = vcmask 130048
  %v293 = vsel %vm292, %v261, 0
  %v295 = vsel %vm292, %v263, 0
  %v297 = vsel %vm292, %v265, 0
  %v299 = vsel %vm292, %v267, 0
  %v301 = vsel %vm292, %v269, 0
  %v303 = vsel %vm292, %v271, 0
  %v305 = vsel %vm292, %v273, 0
  %v307 = vsel %vm292, %v275, 0
  %v309 = vsel %vm292, %v277, 0
  %v311 = vsel %vm292, %v279, 0
  %v313 = vsel %vm292, %v281, 0
  %v315 = vsel %vm292, %v283, 0
  %v317 = vsel %vm292, %v285, 0
  %v319 = vsel %vm292, %v287, 0
  %v321 = vsel %vm292, %v289, 0
  %v323 = vsel %vm292, %v291, 0
  %v325 = vsel %vm292, %v150, 0
  %v327 = vsel %vm292, %v155, 0
  %v329 = vsel %vm292, %v160, 0
  %v331 = vsel %vm292, %v165, 0
  %v333 = vsel %vm292, %v170, 0
  %v335 = vsel %vm292, %v175, 0
  %v337 = vsel %vm292, %v180, 0
  %v339 = vsel %vm292, %v185, 0
  %v341 = vsel %vm292, %v190, 0
  %v343 = vsel %vm292, %v195, 0
  %v345 = vsel %vm292, %v200, 0
  %v347 = vsel %vm292, %v205, 0
  %v349 = vsel %vm292, %v210, 0
  %v351 = vsel %vm292, %v215, 0
  %v353 = vsel %vm292, %v220, 0
  %v355 = vsel %vm292, %v225, 0
  %357 = vmatprep.subr.mxu0 0.0
  %358 = vmatpush1.xpose.msra.mxu0 %v325
  %359 = vmatprep.subr.mxu0 0.0
  %360 = vmatpush1.xpose.msra.mxu0 %v327
  %361 = vmatprep.subr.mxu0 0.0
  %362 = vmatpush1.xpose.msra.mxu0 %v329
  %363 = vmatprep.subr.mxu0 0.0
  %364 = vmatpush1.xpose.msra.mxu0 %v331
  %365 = vmatprep.subr.mxu0 0.0
  %366 = vmatpush1.xpose.msra.mxu0 %v333
  %367 = vmatprep.subr.mxu0 0.0
  %368 = vmatpush1.xpose.msra.mxu0 %v335
  %369 = vmatprep.subr.mxu0 0.0
  %370 = vmatpush1.xpose.msra.mxu0 %v337
  %371 = vmatprep.subr.mxu0 0.0
  %372 = vmatpush1.xpose.msra.mxu0 %v339
  %373 = vmatprep.subr.mxu0 0.0
  %374 = vmatpush1.xpose.msra.mxu0 %v341
  %375 = vmatprep.subr.mxu0 0.0
  %376 = vmatpush1.xpose.msra.mxu0 %v343
  %377 = vmatprep.subr.mxu0 0.0
  %378 = vmatpush1.xpose.msra.mxu0 %v345
  %379 = vmatprep.subr.mxu0 0.0
  %380 = vmatpush1.xpose.msra.mxu0 %v347
  %381 = vmatprep.subr.mxu0 0.0
  %382 = vmatpush1.xpose.msra.mxu0 %v349
  %383 = vmatprep.subr.mxu0 0.0
  %384 = vmatpush1.xpose.msra.mxu0 %v351
  %385 = vmatprep.subr.mxu0 0.0
  %386 = vmatpush1.xpose.msra.mxu0 %v353
  %387 = vmatprep.subr.mxu0 0.0
  %388 = vmatpush1.xpose.msra.mxu0 %v355
  %389 = vmatprep.subr.mxu0 0.0
  %390 = vmatpush1.xpose.msra.mxu0 0.0
  %391 = vmatprep.subr.mxu0 0.0
  %392 = vmatpush1.xpose.msra.mxu0 0.0
  %393 = vmatprep.subr.mxu0 0.0
  %394 = vmatpush1.xpose.msra.mxu0 0.0
  %395 = vmatprep.subr.mxu0 0.0
  %396 = vmatpush1.xpose.msra.mxu0 0.0
  %397 = vmatprep.subr.mxu0 0.0
  %398 = vmatpush1.xpose.msra.mxu0 0.0
  %399 = vmatprep.subr.mxu0 0.0
  %400 = vmatpush1.xpose.msra.mxu0 0.0
  %401 = vmatprep.subr.mxu0 0.0
  %402 = vmatpush1.xpose.msra.mxu0 0.0
  %403 = vmatprep.subr.mxu0 0.0
  %404 = vmatpush1.xpose.msra.mxu0 0.0
  %405 = vmatprep.subr.mxu0 0.0
  %406 = vmatpush1.xpose.msra.mxu0 0.0
  %407 = vmatprep.subr.mxu0 0.0
  %408 = vmatpush1.xpose.msra.mxu0 0.0
  %409 = vmatprep.subr.mxu0 0.0
  %410 = vmatpush1.xpose.msra.mxu0 0.0
  %411 = vmatprep.subr.mxu0 0.0
  %412 = vmatpush1.xpose.msra.mxu0 0.0
  %413 = vmatprep.subr.mxu0 0.0
  %414 = vmatpush1.xpose.msra.mxu0 0.0
  %415 = vmatprep.subr.mxu0 0.0
  %416 = vmatpush1.xpose.msra.mxu0 0.0
  %417 = vmatprep.subr.mxu0 0.0
  %418 = vmatpush1.xpose.msra.mxu0 0.0
  %419 = vmatprep.subr.mxu0 0.0
  %420 = vmatpush1.xpose.msra.mxu0 0.0
  %421 = vmatprep.mubr.f32.mxu0 0.0
  %422 = vmatmul.mubr.f32.gmra.mrb[0].mxu0 %v293
  %v423 = vpop.f32.mrb[0].mxu0
  %v424 = vadd.f32 %v228, %v423
  %v425 = vpop.f32.mrb[0].mxu0
  %426 = vmatprep.mubr.f32.mxu0 0.0
  %427 = vmatmul.mubr.f32.gmra.mrb[0].mxu0 %v295
  %v428 = vpop.f32.mrb[0].mxu0
  %v429 = vadd.f32 %v229, %v428
  %v430 = vpop.f32.mrb[0].mxu0
  %431 = vmatprep.mubr.f32.mxu0 0.0
  %432 = vmatmul.mubr.f32.gmra.mrb[0].mxu0 %v297
  %v433 = vpop.f32.mrb[0].mxu0
  %v434 = vadd.f32 %v230, %v433
  %v435 = vpop.f32.mrb[0].mxu0
  %436 = vmatprep.mubr.f32.mxu0 0.0
  %437 = vmatmul.mubr.f32.gmra.mrb[0].mxu0 %v299
  %v438 = vpop.f32.mrb[0].mxu0
  %v439 = vadd.f32 %v231, %v438
  %v440 = vpop.f32.mrb[0].mxu0
  %441 = vmatprep.mubr.f32.mxu0 0.0
  %442 = vmatmul.mubr.f32.gmra.mrb[0].mxu0 %v301
  %v443 = vpop.f32.mrb[0].mxu0
  %v444 = vadd.f32 %v232, %v443
  %v445 = vpop.f32.mrb[0].mxu0
  %446 = vmatprep.mubr.f32.mxu0 0.0
  %447 = vmatmul.mubr.f32.gmra.mrb[0].mxu0 %v303
  %v448 = vpop.f32.mrb[0].mxu0
  %v449 = vadd.f32 %v233, %v448
  %v450 = vpop.f32.mrb[0].mxu0
  %451 = vmatprep.mubr.f32.mxu0 0.0
  %452 = vmatmul.mubr.f32.gmra.mrb[0].mxu0 %v305
  %v453 = vpop.f32.mrb[0].mxu0
  %v454 = vadd.f32 %v234, %v453
  %v455 = vpop.f32.mrb[0].mxu0
  %456 = vmatprep.mubr.f32.mxu0 0.0
  %457 = vmatmul.mubr.f32.gmra.mrb[0].mxu0 %v307
  %v458 = vpop.f32.mrb[0].mxu0
  %v459 = vadd.f32 %v235, %v458
  %v460 = vpop.f32.mrb[0].mxu0
  %461 = vmatprep.mubr.f32.mxu0 0.0
  %462 = vmatmul.mubr.f32.gmra.mrb[0].mxu0 %v309
  %v463 = vpop.f32.mrb[0].mxu0
  %v464 = vadd.f32 %v236, %v463
  %v465 = vpop.f32.mrb[0].mxu0
  %466 = vmatprep.mubr.f32.mxu0 0.0
  %467 = vmatmul.mubr.f32.gmra.mrb[0].mxu0 %v311
  %v468 = vpop.f32.mrb[0].mxu0
  %v469 = vadd.f32 %v237, %v468
  %v470 = vpop.f32.mrb[0].mxu0
  %471 = vmatprep.mubr.f32.mxu0 0.0
  %472 = vmatmul.mubr.f32.gmra.mrb[0].mxu0 %v313
  %v473 = vpop.f32.mrb[0].mxu0
  %v474 = vadd.f32 %v238, %v473
  %v475 = vpop.f32.mrb[0].mxu0
  %476 = vmatprep.mubr.f32.mxu0 0.0
  %477 = vmatmul.mubr.f32.gmra.mrb[0].mxu0 %v315
  %v478 = vpop.f32.mrb[0].mxu0
  %v479 = vadd.f32 %v239, %v478
  %v480 = vpop.f32.mrb[0].mxu0
  %481 = vmatprep.mubr.f32.mxu0 0.0
  %482 = vmatmul.mubr.f32.gmra.mrb[0].mxu0 %v317
  %v483 = vpop.f32.mrb[0].mxu0
  %v484 = vadd.f32 %v240, %v483
  %v485 = vpop.f32.mrb[0].mxu0
  %486 = vmatprep.mubr.f32.mxu0 0.0
  %487 = vmatmul.mubr.f32.gmra.mrb[0].mxu0 %v319
  %v488 = vpop.f32.mrb[0].mxu0
  %v489 = vadd.f32 %v241, %v488
  %v490 = vpop.f32.mrb[0].mxu0
  %491 = vmatprep.mubr.f32.mxu0 0.0
  %492 = vmatmul.mubr.f32.gmra.mrb[0].mxu0 %v321
  %v493 = vpop.f32.mrb[0].mxu0
  %v494 = vadd.f32 %v242, %v493
  %v495 = vpop.f32.mrb[0].mxu0
  %496 = vmatprep.mubr.f32.mxu0 0.0
  %497 = vmatmul.mubr.f32.gmra.mrb[0].mxu0 %v323
  %v498 = vpop.f32.mrb[0].mxu0
  %v499 = vadd.f32 %v243, %v498
  %v500 = vpop.f32.mrb[0].mxu0
  %501 = vdwg.mxu0
  %502 = vmax.xlane.f32.xlu0 %v424
  %v503 = vpop.xlane.xlu0 %502
  %504 = vmax.xlane.f32.xlu0 %v429
  %v505 = vpop.xlane.xlu0 %504
  %506 = vmax.xlane.f32.xlu0 %v434
  %v507 = vpop.xlane.xlu0 %506
  %508 = vmax.xlane.f32.xlu0 %v439
  %v509 = vpop.xlane.xlu0 %508
  %510 = vmax.xlane.f32.xlu0 %v444
  %v511 = vpop.xlane.xlu0 %510
  %512 = vmax.xlane.f32.xlu0 %v449
  %v513 = vpop.xlane.xlu0 %512
  %514 = vmax.xlane.f32.xlu0 %v454
  %v515 = vpop.xlane.xlu0 %514
  %516 = vmax.xlane.f32.xlu0 %v459
  %v517 = vpop.xlane.xlu0 %516
  %518 = vmax.xlane.f32.xlu0 %v464
  %v519 = vpop.xlane.xlu0 %518
  %520 = vmax.xlane.f32.xlu0 %v469
  %v521 = vpop.xlane.xlu0 %520
  %522 = vmax.xlane.f32.xlu0 %v474
  %v523 = vpop.xlane.xlu0 %522
  %524 = vmax.xlane.f32.xlu0 %v479
  %v525 = vpop.xlane.xlu0 %524
  %526 = vmax.xlane.f32.xlu0 %v484
  %v527 = vpop.xlane.xlu0 %526
  %528 = vmax.xlane.f32.xlu0 %v489
  %v529 = vpop.xlane.xlu0 %528
  %530 = vmax.xlane.f32.xlu0 %v494
  %v531 = vpop.xlane.xlu0 %530
  %532 = vmax.xlane.f32.xlu0 %v499
  %v533 = vpop.xlane.xlu0 %532
  %v534 = vsub.f32 %v424, %v503
  %v535 = vsub.f32 %v429, %v505
  %v536 = vsub.f32 %v434, %v507
  %v537 = vsub.f32 %v439, %v509
  %v538 = vsub.f32 %v444, %v511
  %v539 = vsub.f32 %v449, %v513
  %v540 = vsub.f32 %v454, %v515
  %v541 = vsub.f32 %v459, %v517
  %v542 = vsub.f32 %v464, %v519
  %v543 = vsub.f32 %v469, %v521
  %v544 = vsub.f32 %v474, %v523
  %v545 = vsub.f32 %v479, %v525
  %v546 = vsub.f32 %v484, %v527
  %v547 = vsub.f32 %v489, %v529
  %v548 = vsub.f32 %v494, %v531
  %v549 = vsub.f32 %v499, %v533
  %v550 = vmul.f32 %v534, 1.442695
  %v551 = vpow.pop %v550
  %v552 = vmul.f32 %v535, 1.442695
  %v553 = vpow.pop %v552
  %v554 = vmul.f32 %v536, 1.442695
  %v555 = vpow.pop %v554
  %v556 = vmul.f32 %v537, 1.442695
  %v557 = vpow.pop %v556
  %v558 = vmul.f32 %v538, 1.442695
  %v559 = vpow.pop %v558
  %v560 = vmul.f32 %v539, 1.442695
  %v561 = vpow.pop %v560
  %v562 = vmul.f32 %v540, 1.442695
  %v563 = vpow.pop %v562
  %v564 = vmul.f32 %v541, 1.442695
  %v565 = vpow.pop %v564
  %v566 = vmul.f32 %v542, 1.442695
  %v567 = vpow.pop %v566
  %v568 = vmul.f32 %v543, 1.442695
  %v569 = vpow.pop %v568
  %v570 = vmul.f32 %v544, 1.442695
  %v571 = vpow.pop %v570
  %v572 = vmul.f32 %v545, 1.442695
  %v573 = vpow.pop %v572
  %v574 = vmul.f32 %v546, 1.442695
  %v575 = vpow.pop %v574
  %v576 = vmul.f32 %v547, 1.442695
  %v577 = vpow.pop %v576
  %v578 = vmul.f32 %v548, 1.442695
  %v579 = vpow.pop %v578
  %v580 = vmul.f32 %v549, 1.442695
  %v581 = vpow.pop %v580
  %582 = vmatprep.subr.mxu0 0.0
  %583 = vmatpush1.msra.mxu0 1.0
  %584 = vmatprep.subr.mxu0 0.0
  %585 = vmatpush1.msra.mxu0 1.0
  %586 = vmatprep.subr.mxu0 0.0
  %587 = vmatpush1.msra.mxu0 1.0
  %588 = vmatprep.subr.mxu0 0.0
  %589 = vmatpush1.msra.mxu0 1.0
  %590 = vmatprep.subr.mxu0 0.0
  %591 = vmatpush1.msra.mxu0 1.0
  %592 = vmatprep.subr.mxu0 0.0
  %593 = vmatpush1.msra.mxu0 1.0
  %594 = vmatprep.subr.mxu0 0.0
  %595 = vmatpush1.msra.mxu0 1.0
  %596 = vmatprep.subr.mxu0 0.0
  %597 = vmatpush1.msra.mxu0 1.0
  %598 = vmatprep.subr.mxu0 0.0
  %599 = vmatpush1.msra.mxu0 1.0
  %600 = vmatprep.subr.mxu0 0.0
  %601 = vmatpush1.msra.mxu0 1.0
  %602 = vmatprep.subr.mxu0 0.0
  %603 = vmatpush1.msra.mxu0 1.0
  %604 = vmatprep.subr.mxu0 0.0
  %605 = vmatpush1.msra.mxu0 1.0
  %606 = vmatprep.subr.mxu0 0.0
  %607 = vmatpush1.msra.mxu0 1.0
  %608 = vmatprep.subr.mxu0 0.0
  %609 = vmatpush1.msra.mxu0 1.0
  %610 = vmatprep.subr.mxu0 0.0
  %611 = vmatpush1.msra.mxu0 1.0
  %612 = vmatprep.subr.mxu0 0.0
  %613 = vmatpush1.msra.mxu0 1.0
  %614 = vmatprep.subr.mxu0 0.0
  %615 = vmatpush1.msra.mxu0 0.0
  %616 = vmatprep.subr.mxu0 0.0
  %617 = vmatpush1.msra.mxu0 0.0
  %618 = vmatprep.subr.mxu0 0.0
  %619 = vmatpush1.msra.mxu0 0.0
  %620 = vmatprep.subr.mxu0 0.0
  %621 = vmatpush1.msra.mxu0 0.0
  %622 = vmatprep.subr.mxu0 0.0
  %623 = vmatpush1.msra.mxu0 0.0
  %624 = vmatprep.subr.mxu0 0.0
  %625 = vmatpush1.msra.mxu0 0.0
  %626 = vmatprep.subr.mxu0 0.0
  %627 = vmatpush1.msra.mxu0 0.0
  %628 = vmatprep.subr.mxu0 0.0
  %629 = vmatpush1.msra.mxu0 0.0
  %630 = vmatprep.subr.mxu0 0.0
  %631 = vmatpush1.msra.mxu0 0.0
  %632 = vmatprep.subr.mxu0 0.0
  %633 = vmatpush1.msra.mxu0 0.0
  %634 = vmatprep.subr.mxu0 0.0
  %635 = vmatpush1.msra.mxu0 0.0
  %636 = vmatprep.subr.mxu0 0.0
  %637 = vmatpush1.msra.mxu0 0.0
  %638 = vmatprep.subr.mxu0 0.0
  %639 = vmatpush1.msra.mxu0 0.0
  %640 = vmatprep.subr.mxu0 0.0
  %641 = vmatpush1.msra.mxu0 0.0
  %642 = vmatprep.subr.mxu0 0.0
  %643 = vmatpush1.msra.mxu0 0.0
  %644 = vmatprep.subr.mxu0 0.0
  %645 = vmatpush1.msra.mxu0 0.0
  %646 = vmatprep.mubr.f32.mxu0 0.0
  %647 = vmatmul.mubr.f32.gmra.mrb[0].mxu0 %v551
  %v648 = vpop.f32.mrb[0].mxu0
  %v649 = vadd.f32 0.0, %v648
  %v650 = vpop.f32.mrb[0].mxu0
  %651 = vmatprep.mubr.f32.mxu0 0.0
  %652 = vmatmul.mubr.f32.gmra.mrb[0].mxu0 %v553
  %v653 = vpop.f32.mrb[0].mxu0
  %v654 = vadd.f32 0.0, %v653
  %v655 = vpop.f32.mrb[0].mxu0
  %656 = vmatprep.mubr.f32.mxu0 0.0
  %657 = vmatmul.mubr.f32.gmra.mrb[0].mxu0 %v555
  %v658 = vpop.f32.mrb[0].mxu0
  %v659 = vadd.f32 0.0, %v658
  %v660 = vpop.f32.mrb[0].mxu0
  %661 = vmatprep.mubr.f32.mxu0 0.0
  %662 = vmatmul.mubr.f32.gmra.mrb[0].mxu0 %v557
  %v663 = vpop.f32.mrb[0].mxu0
  %v664 = vadd.f32 0.0, %v663
  %v665 = vpop.f32.mrb[0].mxu0
  %666 = vmatprep.mubr.f32.mxu0 0.0
  %667 = vmatmul.mubr.f32.gmra.mrb[0].mxu0 %v559
  %v668 = vpop.f32.mrb[0].mxu0
  %v669 = vadd.f32 0.0, %v668
  %v670 = vpop.f32.mrb[0].mxu0
  %671 = vmatprep.mubr.f32.mxu0 0.0
  %672 = vmatmul.mubr.f32.gmra.mrb[0].mxu0 %v561
  %v673 = vpop.f32.mrb[0].mxu0
  %v674 = vadd.f32 0.0, %v673
  %v675 = vpop.f32.mrb[0].mxu0
  %676 = vmatprep.mubr.f32.mxu0 0.0
  %677 = vmatmul.mubr.f32.gmra.mrb[0].mxu0 %v563
  %v678 = vpop.f32.mrb[0].mxu0
  %v679 = vadd.f32 0.0, %v678
  %v680 = vpop.f32.mrb[0].mxu0
  %681 = vmatprep.mubr.f32.mxu0 0.0
  %682 = vmatmul.mubr.f32.gmra.mrb[0].mxu0 %v565
  %v683 = vpop.f32.mrb[0].mxu0
  %v684 = vadd.f32 0.0, %v683
  %v685 = vpop.f32.mrb[0].mxu0
  %686 = vmatprep.mubr.f32.mxu0 0.0
  %687 = vmatmul.mubr.f32.gmra.mrb[0].mxu0 %v567
  %v688 = vpop.f32.mrb[0].mxu0
  %v689 = vadd.f32 0.0, %v688
  %v690 = vpop.f32.mrb[0].mxu0
  %691 = vmatprep.mubr.f32.mxu0 0.0
  %692 = vmatmul.mubr.f32.gmra.mrb[0].mxu0 %v569
  %v693 = vpop.f32.mrb[0].mxu0
  %v694 = vadd.f32 0.0, %v693
  %v695 = vpop.f32.mrb[0].mxu0
  %696 = vmatprep.mubr.f32.mxu0 0.0
  %697 = vmatmul.mubr.f32.gmra.mrb[0].mxu0 %v571
  %v698 = vpop.f32.mrb[0].mxu0
  %v699 = vadd.f32 0.0, %v698
  %v700 = vpop.f32.mrb[0].mxu0
  %701 = vmatprep.mubr.f32.mxu0 0.0
  %702 = vmatmul.mubr.f32.gmra.mrb[0].mxu0 %v573
  %v703 = vpop.f32.mrb[0].mxu0
  %v704 = vadd.f32 0.0, %v703
  %v705 = vpop.f32.mrb[0].mxu0
  %706 = vmatprep.mubr.f32.mxu0 0.0
  %707 = vmatmul.mubr.f32.gmra.mrb[0].mxu0 %v575
  %v708 = vpop.f32.mrb[0].mxu0
  %v709 = vadd.f32 0.0, %v708
  %v710 = vpop.f32.mrb[0].mxu0
  %711 = vmatprep.mubr.f32.mxu0 0.0
  %712 = vmatmul.mubr.f32.gmra.mrb[0].mxu0 %v577
  %v713 = vpop.f32.mrb[0].mxu0
  %v714 = vadd.f32 0.0, %v713
  %v715 = vpop.f32.mrb[0].mxu0
  %716 = vmatprep.mubr.f32.mxu0 0.0
  %717 = vmatmul.mubr.f32.gmra.mrb[0].mxu0 %v579
  %v718 = vpop.f32.mrb[0].mxu0
  %v719 = vadd.f32 0.0, %v718
  %v720 = vpop.f32.mrb[0].mxu0
  %721 = vmatprep.mubr.f32.mxu0 0.0
  %722 = vmatmul.mubr.f32.gmra.mrb[0].mxu0 %v581
  %v723 = vpop.f32.mrb[0].mxu0
  %v724 = vadd.f32 0.0, %v723
  %v725 = vpop.f32.mrb[0].mxu0
  %726 = vdwg.mxu0
  %727 = vrot.lane.b32.xlu0 %v150, 96
  %v728 = vpop.permute.xlu0 %727
  %729 = vrot.lane.b32.xlu0 %v155, 96
  %v730 = vpop.permute.xlu0 %729
  %731 = vrot.lane.b32.xlu0 %v160, 96
  %v732 = vpop.permute.xlu0 %731
  %733 = vrot.lane.b32.xlu0 %v165, 96
  %v734 = vpop.permute.xlu0 %733
  %735 = vrot.lane.b32.xlu0 %v170, 96
  %v736 = vpop.permute.xlu0 %735
  %737 = vrot.lane.b32.xlu0 %v175, 96
  %v738 = vpop.permute.xlu0 %737
  %739 = vrot.lane.b32.xlu0 %v180, 96
  %v740 = vpop.permute.xlu0 %739
  %741 = vrot.lane.b32.xlu0 %v185, 96
  %v742 = vpop.permute.xlu0 %741
  %743 = vrot.lane.b32.xlu0 %v190, 96
  %v744 = vpop.permute.xlu0 %743
  %745 = vrot.lane.b32.xlu0 %v195, 96
  %v746 = vpop.permute.xlu0 %745
  %747 = vrot.lane.b32.xlu0 %v200, 96
  %v748 = vpop.permute.xlu0 %747
  %749 = vrot.lane.b32.xlu0 %v205, 96
  %v750 = vpop.permute.xlu0 %749
  %751 = vrot.lane.b32.xlu0 %v210, 96
  %v752 = vpop.permute.xlu0 %751
  %753 = vrot.lane.b32.xlu0 %v215, 96
  %v754 = vpop.permute.xlu0 %753
  %755 = vrot.lane.b32.xlu0 %v220, 96
  %v756 = vpop.permute.xlu0 %755
  %757 = vrot.lane.b32.xlu0 %v225, 96
  %v758 = vpop.permute.xlu0 %757
  %775 = vmatprep.subr.mxu0 0.0
  %776 = vmatpush1.msra.mxu0 %v728
  %777 = vmatprep.subr.mxu0 0.0
  %778 = vmatpush1.msra.mxu0 %v730
  %779 = vmatprep.subr.mxu0 0.0
  %780 = vmatpush1.msra.mxu0 %v732
  %781 = vmatprep.subr.mxu0 0.0
  %782 = vmatpush1.msra.mxu0 %v734
  %783 = vmatprep.subr.mxu0 0.0
  %784 = vmatpush1.msra.mxu0 %v736
  %785 = vmatprep.subr.mxu0 0.0
  %786 = vmatpush1.msra.mxu0 %v738
  %787 = vmatprep.subr.mxu0 0.0
  %788 = vmatpush1.msra.mxu0 %v740
  %789 = vmatprep.subr.mxu0 0.0
  %790 = vmatpush1.msra.mxu0 %v742
  %791 = vmatprep.subr.mxu0 0.0
  %792 = vmatpush1.msra.mxu0 %v744
  %793 = vmatprep.subr.mxu0 0.0
  %794 = vmatpush1.msra.mxu0 %v746
  %795 = vmatprep.subr.mxu0 0.0
  %796 = vmatpush1.msra.mxu0 %v748
  %797 = vmatprep.subr.mxu0 0.0
  %798 = vmatpush1.msra.mxu0 %v750
  %799 = vmatprep.subr.mxu0 0.0
  %800 = vmatpush1.msra.mxu0 %v752
  %801 = vmatprep.subr.mxu0 0.0
  %802 = vmatpush1.msra.mxu0 %v754
  %803 = vmatprep.subr.mxu0 0.0
  %804 = vmatpush1.msra.mxu0 %v756
  %805 = vmatprep.subr.mxu0 0.0
  %806 = vmatpush1.msra.mxu0 %v758
  %807 = vmatprep.subr.mxu0 0.0
  %808 = vmatpush1.msra.mxu0 0.0
  %809 = vmatprep.subr.mxu0 0.0
  %810 = vmatpush1.msra.mxu0 0.0
  %811 = vmatprep.subr.mxu0 0.0
  %812 = vmatpush1.msra.mxu0 0.0
  %813 = vmatprep.subr.mxu0 0.0
  %814 = vmatpush1.msra.mxu0 0.0
  %815 = vmatprep.subr.mxu0 0.0
  %816 = vmatpush1.msra.mxu0 0.0
  %817 = vmatprep.subr.mxu0 0.0
  %818 = vmatpush1.msra.mxu0 0.0
  %819 = vmatprep.subr.mxu0 0.0
  %820 = vmatpush1.msra.mxu0 0.0
  %821 = vmatprep.subr.mxu0 0.0
  %822 = vmatpush1.msra.mxu0 0.0
  %823 = vmatprep.subr.mxu0 0.0
  %824 = vmatpush1.msra.mxu0 0.0
  %825 = vmatprep.subr.mxu0 0.0
  %826 = vmatpush1.msra.mxu0 0.0
  %827 = vmatprep.subr.mxu0 0.0
  %828 = vmatpush1.msra.mxu0 0.0
  %829 = vmatprep.subr.mxu0 0.0
  %830 = vmatpush1.msra.mxu0 0.0
  %831 = vmatprep.subr.mxu0 0.0
  %832 = vmatpush1.msra.mxu0 0.0
  %833 = vmatprep.subr.mxu0 0.0
  %834 = vmatpush1.msra.mxu0 0.0
  %835 = vmatprep.subr.mxu0 0.0
  %836 = vmatpush1.msra.mxu0 0.0
  %837 = vmatprep.subr.mxu0 0.0
  %838 = vmatpush1.msra.mxu0 0.0
  %839 = vmatprep.mubr.f32.mxu0 0.0
  %840 = vmatmul.mubr.f32.gmra.mrb[0].mxu0 %v551
  %v841 = vpop.f32.mrb[0].mxu0
  %v842 = vadd.f32 0.0, %v841
  %v843 = vpop.f32.mrb[0].mxu0
  %844 = vmatprep.mubr.f32.mxu0 0.0
  %845 = vmatmul.mubr.f32.gmra.mrb[0].mxu0 %v553
  %v846 = vpop.f32.mrb[0].mxu0
  %v847 = vadd.f32 0.0, %v846
  %v848 = vpop.f32.mrb[0].mxu0
  %849 = vmatprep.mubr.f32.mxu0 0.0
  %850 = vmatmul.mubr.f32.gmra.mrb[0].mxu0 %v555
  %v851 = vpop.f32.mrb[0].mxu0
  %v852 = vadd.f32 0.0, %v851
  %v853 = vpop.f32.mrb[0].mxu0
  %854 = vmatprep.mubr.f32.mxu0 0.0
  %855 = vmatmul.mubr.f32.gmra.mrb[0].mxu0 %v557
  %v856 = vpop.f32.mrb[0].mxu0
  %v857 = vadd.f32 0.0, %v856
  %v858 = vpop.f32.mrb[0].mxu0
  %859 = vmatprep.mubr.f32.mxu0 0.0
  %860 = vmatmul.mubr.f32.gmra.mrb[0].mxu0 %v559
  %v861 = vpop.f32.mrb[0].mxu0
  %v862 = vadd.f32 0.0, %v861
  %v863 = vpop.f32.mrb[0].mxu0
  %864 = vmatprep.mubr.f32.mxu0 0.0
  %865 = vmatmul.mubr.f32.gmra.mrb[0].mxu0 %v561
  %v866 = vpop.f32.mrb[0].mxu0
  %v867 = vadd.f32 0.0, %v866
  %v868 = vpop.f32.mrb[0].mxu0
  %869 = vmatprep.mubr.f32.mxu0 0.0
  %870 = vmatmul.mubr.f32.gmra.mrb[0].mxu0 %v563
  %v871 = vpop.f32.mrb[0].mxu0
  %v872 = vadd.f32 0.0, %v871
  %v873 = vpop.f32.mrb[0].mxu0
  %874 = vmatprep.mubr.f32.mxu0 0.0
  %875 = vmatmul.mubr.f32.gmra.mrb[0].mxu0 %v565
  %v876 = vpop.f32.mrb[0].mxu0
  %v877 = vadd.f32 0.0, %v876
  %v878 = vpop.f32.mrb[0].mxu0
  %879 = vmatprep.mubr.f32.mxu0 0.0
  %880 = vmatmul.mubr.f32.gmra.mrb[0].mxu0 %v567
  %v881 = vpop.f32.mrb[0].mxu0
  %v882 = vadd.f32 0.0, %v881
  %v883 = vpop.f32.mrb[0].mxu0
  %884 = vmatprep.mubr.f32.mxu0 0.0
  %885 = vmatmul.mubr.f32.gmra.mrb[0].mxu0 %v569
  %v886 = vpop.f32.mrb[0].mxu0
  %v887 = vadd.f32 0.0, %v886
  %v888 = vpop.f32.mrb[0].mxu0
  %889 = vmatprep.mubr.f32.mxu0 0.0
  %890 = vmatmul.mubr.f32.gmra.mrb[0].mxu0 %v571
  %v891 = vpop.f32.mrb[0].mxu0
  %v892 = vadd.f32 0.0, %v891
  %v893 = vpop.f32.mrb[0].mxu0
  %894 = vmatprep.mubr.f32.mxu0 0.0
  %895 = vmatmul.mubr.f32.gmra.mrb[0].mxu0 %v573
  %v896 = vpop.f32.mrb[0].mxu0
  %v897 = vadd.f32 0.0, %v896
  %v898 = vpop.f32.mrb[0].mxu0
  %899 = vmatprep.mubr.f32.mxu0 0.0
  %900 = vmatmul.mubr.f32.gmra.mrb[0].mxu0 %v575
  %v901 = vpop.f32.mrb[0].mxu0
  %v902 = vadd.f32 0.0, %v901
  %v903 = vpop.f32.mrb[0].mxu0
  %904 = vmatprep.mubr.f32.mxu0 0.0
  %905 = vmatmul.mubr.f32.gmra.mrb[0].mxu0 %v577
  %v906 = vpop.f32.mrb[0].mxu0
  %v907 = vadd.f32 0.0, %v906
  %v908 = vpop.f32.mrb[0].mxu0
  %909 = vmatprep.mubr.f32.mxu0 0.0
  %910 = vmatmul.mubr.f32.gmra.mrb[0].mxu0 %v579
  %v911 = vpop.f32.mrb[0].mxu0
  %v912 = vadd.f32 0.0, %v911
  %v913 = vpop.f32.mrb[0].mxu0
  %914 = vmatprep.mubr.f32.mxu0 0.0
  %915 = vmatmul.mubr.f32.gmra.mrb[0].mxu0 %v581
  %v916 = vpop.f32.mrb[0].mxu0
  %v917 = vadd.f32 0.0, %v916
  %v918 = vpop.f32.mrb[0].mxu0
  %919 = vdwg.mxu0
  %v920 = vrcp.pop %v649
  %v921 = vrcp.pop %v654
  %v922 = vrcp.pop %v659
  %v923 = vrcp.pop %v664
  %v924 = vrcp.pop %v669
  %v925 = vrcp.pop %v674
  %v926 = vrcp.pop %v679
  %v927 = vrcp.pop %v684
  %v928 = vrcp.pop %v689
  %v929 = vrcp.pop %v694
  %v930 = vrcp.pop %v699
  %v931 = vrcp.pop %v704
  %v932 = vrcp.pop %v709
  %v933 = vrcp.pop %v714
  %v934 = vrcp.pop %v719
  %v935 = vrcp.pop %v724
  %v936 = vmul.f32 %v649, %v920
  %v937 = vmul.f32 %v654, %v921
  %v938 = vmul.f32 %v659, %v922
  %v939 = vmul.f32 %v664, %v923
  %v940 = vmul.f32 %v669, %v924
  %v941 = vmul.f32 %v674, %v925
  %v942 = vmul.f32 %v679, %v926
  %v943 = vmul.f32 %v684, %v927
  %v944 = vmul.f32 %v689, %v928
  %v945 = vmul.f32 %v694, %v929
  %v946 = vmul.f32 %v699, %v930
  %v947 = vmul.f32 %v704, %v931
  %v948 = vmul.f32 %v709, %v932
  %v949 = vmul.f32 %v714, %v933
  %v950 = vmul.f32 %v719, %v934
  %v951 = vmul.f32 %v724, %v935
  %v952 = vsub.f32 2.0, %v936
  %v953 = vsub.f32 2.0, %v937
  %v954 = vsub.f32 2.0, %v938
  %v955 = vsub.f32 2.0, %v939
  %v956 = vsub.f32 2.0, %v940
  %v957 = vsub.f32 2.0, %v941
  %v958 = vsub.f32 2.0, %v942
  %v959 = vsub.f32 2.0, %v943
  %v960 = vsub.f32 2.0, %v944
  %v961 = vsub.f32 2.0, %v945
  %v962 = vsub.f32 2.0, %v946
  %v963 = vsub.f32 2.0, %v947
  %v964 = vsub.f32 2.0, %v948
  %v965 = vsub.f32 2.0, %v949
  %v966 = vsub.f32 2.0, %v950
  %v967 = vsub.f32 2.0, %v951
  %v968 = vmul.f32 %v920, %v952
  %v969 = vmul.f32 %v921, %v953
  %v970 = vmul.f32 %v922, %v954
  %v971 = vmul.f32 %v923, %v955
  %v972 = vmul.f32 %v924, %v956
  %v973 = vmul.f32 %v925, %v957
  %v974 = vmul.f32 %v926, %v958
  %v975 = vmul.f32 %v927, %v959
  %v976 = vmul.f32 %v928, %v960
  %v977 = vmul.f32 %v929, %v961
  %v978 = vmul.f32 %v930, %v962
  %v979 = vmul.f32 %v931, %v963
  %v980 = vmul.f32 %v932, %v964
  %v981 = vmul.f32 %v933, %v965
  %v982 = vmul.f32 %v934, %v966
  %v983 = vmul.f32 %v935, %v967
  %v984 = vmul.f32 %v842, %v968
  %v985 = vmul.f32 %v847, %v969
  %v986 = vmul.f32 %v852, %v970
  %v987 = vmul.f32 %v857, %v971
  %v988 = vmul.f32 %v862, %v972
  %v989 = vmul.f32 %v867, %v973
  %v990 = vmul.f32 %v872, %v974
  %v991 = vmul.f32 %v877, %v975
  %v992 = vmul.f32 %v882, %v976
  %v993 = vmul.f32 %v887, %v977
  %v994 = vmul.f32 %v892, %v978
  %v995 = vmul.f32 %v897, %v979
  %v996 = vmul.f32 %v902, %v980
  %v997 = vmul.f32 %v907, %v981
  %v998 = vmul.f32 %v912, %v982
  %v999 = vmul.f32 %v917, %v983
  %1000 = vst.msk [vmem:[%s3] sm:$0xff] %vm292, %v984
  %1001 = vst.msk [vmem:[%s3 + $0x8] sm:$0xff] %vm292, %v985
  %1002 = vst.msk [vmem:[%s3 + $0x10] sm:$0xff] %vm292, %v986
  %1003 = vst.msk [vmem:[%s3 + $0x18] sm:$0xff] %vm292, %v987
  %1004 = vst.msk [vmem:[%s3 + $0x20] sm:$0xff] %vm292, %v988
  %1005 = vst.msk [vmem:[%s3 + $0x28] sm:$0xff] %vm292, %v989
  %1006 = vst.msk [vmem:[%s3 + $0x30] sm:$0xff] %vm292, %v990
  %1007 = vst.msk [vmem:[%s3 + $0x38] sm:$0xff] %vm292, %v991
  %1008 = vst.msk [vmem:[%s3 + $0x40] sm:$0xff] %vm292, %v992
  %1009 = vst.msk [vmem:[%s3 + $0x48] sm:$0xff] %vm292, %v993
  %1010 = vst.msk [vmem:[%s3 + $0x50] sm:$0xff] %vm292, %v994
  %1011 = vst.msk [vmem:[%s3 + $0x58] sm:$0xff] %vm292, %v995
  %1012 = vst.msk [vmem:[%s3 + $0x60] sm:$0xff] %vm292, %v996
  %1013 = vst.msk [vmem:[%s3 + $0x68] sm:$0xff] %vm292, %v997
  %1014 = vst.msk [vmem:[%s3 + $0x70] sm:$0xff] %vm292, %v998
  %1015 = vst.msk [vmem:[%s3 + $0x78] sm:$0xff] %vm292, %v999
  // Predicated region
  $region14: #{tpu_custom_call.1} parent=0 // pred_check
    _
  $region15: #{tpu_custom_call.1} parent=0 // pred_check_branch
    %1017 = sbr.rel (0) target = $region17
  $region16: #{tpu_custom_call.1} parent=0 // pred_region
    _
  $region17: #{tpu_custom_call.1} parent=0 // pred_fallthru
    _
  // Predicated region
  $region18: #{tpu_custom_call.1} parent=0 // pred_check
    _
  $region19: #{tpu_custom_call.1} parent=0 // pred_check_branch
    %1019 = sbr.rel (0) target = $region21
  $region20: #{tpu_custom_call.1} parent=0 // pred_region
    _
  $region21: #{tpu_custom_call.1} parent=0 // pred_fallthru
    _

</llo_original>
